<compile_context>
chip_gen: v6e
topology: v6e:2x2x1
jax: 0.10.0
libtpu: 0.0.40
codegen_flags: <defaults>
</compile_context>

<pallas_src>
import functools

import jax
import jax.numpy as jnp
from jax.experimental import pallas as pl
from jax.experimental.pallas import tpu as pltpu

EPS = 1e-6


def _round_up(x, m):
    return ((x + m - 1) // m) * m


def _hyperbolic_align_kernel(qt_ref, kt_ref, w1_ref, b1_ref, w2_ref, b2_ref,
                             w3_ref, b3_ref, o_ref, *, q_klein, k_klein, d_feat):
    # Lane-dense layout: batch rows on the 128-lane axis, tiny feature dims
    # (D inputs, 8 hidden units) on the sublane axis.
    qt = qt_ref[...].astype(jnp.float32)           # [D, TN] (bf16 inputs also OK)
    kt = kt_ref[...].astype(jnp.float32)           # [D, TN]

    # Tiny weights: load once per tile, stay resident in vregs.
    w1 = w1_ref[...]                               # [8, 1]   Linear(1,8).weight
    b1 = b1_ref[...]                               # [8, 1]
    w2 = w2_ref[...]                               # [8, 8]   Linear(8,8).weight (out, in)
    b2 = b2_ref[...]                               # [8, 1]
    w3 = w3_ref[...]                               # [8, 1]   Linear(8,1).weight^T
    b3 = b3_ref[...]                               # [1, 1]

    def lift(xt, klein):
        # Per-row squared norm via unrolled sublane MACs -> [1, TN] (VPU only).
        n2 = xt[0:1, :] * xt[0:1, :]
        for i in range(1, d_feat):
            n2 = n2 + xt[i:i + 1, :] * xt[i:i + 1, :]
        # Numerical guard; the torch reference would NaN (and breakpoint) for |x| >= 1.
        n2 = jnp.minimum(n2, 1.0 - 1e-6)
        if klein:
            x0 = jax.lax.rsqrt(1.0 - n2)                       # 1/sqrt(1-|x|^2)  (EUP)
            xs = xt * x0
        else:
            inv = pl.reciprocal(1.0 - n2, approx=True)         # 1/(1-|x|^2)      (EUP)
            x0 = (1.0 + n2) * inv
            xs = xt * (2.0 * inv)
        return x0, xs

    q0, qs = lift(qt, q_klein)
    k0, ks = lift(kt, k_klein)

    # Lorentzian product per row: x0*y0 - <x_sp, y_sp>  -> [1, TN]
    sp = qs[0:1, :] * ks[0:1, :]
    for i in range(1, d_feat):
        sp = sp + qs[i:i + 1, :] * ks[i:i + 1, :]
    z = jnp.maximum(q0 * k0 - sp, 1.0)
    # arccosh(z) = log(1 + (z-1) + sqrt((z-1)(z+1))): avoids the z*z-1 cancellation.
    zm1 = z - 1.0
    dist = jnp.log(1.0 + zm1 + jnp.sqrt(zm1 * (z + 1.0)))      # [1, TN]

    # MLP 1->8->8->1 fully on the VPU (8x8 is far too small for the MXU).
    h1 = jnp.maximum(w1 * dist + b1, 0.0)                      # [8, TN]
    acc = w2[:, 0:1] * h1[0:1, :]
    for i in range(1, 8):
        acc = acc + w2[:, i:i + 1] * h1[i:i + 1, :]
    h2 = jnp.maximum(acc + b2, 0.0)                            # [8, TN]
    pre = jnp.sum(h2 * w3, axis=0, keepdims=True) + b3         # [1, TN]

    # sigmoid + 1/(v+EPS) fused; tanh saturates -> no exp overflow for large |pre|.
    sig = 0.5 * jnp.tanh(0.5 * pre) + 0.5
    v = pl.reciprocal(sig + EPS, approx=True)
    # TODO(synk): torch calls breakpoint() on NaN; no in-kernel equivalent.
    o_ref[...] = v.astype(o_ref.dtype)


def hyperbolic_alignment(q, k, params, q_klein=False, k_klein=False,
                         tile_n=16384):
    """q, k: [N, D] float32 (or bfloat16). Returns v: [N] float32."""
    n, d = q.shape
    w1, b1, w2, b2, w3, b3 = params

    tn = min(tile_n, _round_up(n, 128))          # lane-aligned tile of rows
    n_pad = _round_up(n, tn)
    pad = n_pad - n
    # Transpose so the batch dim rides the 128-lane axis; zero-padded rows stay
    # finite all the way through (dist = 0) and are sliced off below.
    qt = jnp.pad(q, ((0, pad), (0, 0))).T        # [D, N_pad]
    kt = jnp.pad(k, ((0, pad), (0, 0))).T        # [D, N_pad]

    kernel = functools.partial(_hyperbolic_align_kernel,
                               q_klein=q_klein, k_klein=k_klein, d_feat=d)

    row_spec = pl.BlockSpec((d, tn), lambda i: (0, i))
    const = lambda shape: pl.BlockSpec(shape, lambda i: (0, 0))

    out = pl.pallas_call(
        kernel,
        out_shape=jax.ShapeDtypeStruct((1, n_pad), jnp.float32),
        grid=(n_pad // tn,),
        in_specs=[
            row_spec, row_spec,                  # q^T, k^T tiles
            const((8, 1)), const((8, 1)),        # w1, b1
            const((8, 8)), const((8, 1)),        # w2, b2
            const((8, 1)), const((1, 1)),        # w3, b3
        ],
        out_specs=pl.BlockSpec((1, tn), lambda i: (0, i)),   # lane-dense output
        compiler_params=pltpu.CompilerParams(
            dimension_semantics=("parallel",)),              # megacore on v7x
    )(qt, kt, w1, b1, w2, b2, w3, b3)
    return out[0, :n]


def init_params(key):
    """nn.Linear default init U(-1/sqrt(fan_in), 1/sqrt(fan_in)); kernel layouts."""
    ks = jax.random.split(key, 6)
    u = lambda kk, shape, fan_in: jax.random.uniform(
        kk, shape, jnp.float32, -1.0 / jnp.sqrt(fan_in), 1.0 / jnp.sqrt(fan_in))
    w1 = u(ks[0], (8, 1), 1.0)   # Linear(1, 8).weight
    b1 = u(ks[1], (8, 1), 1.0)
    w2 = u(ks[2], (8, 8), 8.0)   # Linear(8, 8).weight (out, in)
    b2 = u(ks[3], (8, 1), 8.0)
    w3 = u(ks[4], (8, 1), 8.0)   # Linear(8, 1).weight transposed to [8, 1]
    b3 = u(ks[5], (1, 1), 8.0)
    return (w1, b1, w2, b2, w3, b3)


def _reference(q, k, params, q_klein=False, k_klein=False):
    """Pure-JAX reference for validation."""
    w1, b1, w2, b2, w3, b3 = params

    def lift(x, klein):
        n2 = jnp.minimum(jnp.sum(x * x, -1, keepdims=True), 1.0 - 1e-6)
        if klein:
            x0 = 1.0 / jnp.sqrt(1.0 - n2)
            xs = x * x0
        else:
            x0 = (1.0 + n2) / (1.0 - n2)
            xs = 2.0 * x / (1.0 - n2)
        return x0, xs

    q0, qs = lift(q, q_klein)
    k0, ks_ = lift(k, k_klein)
    z = jnp.maximum(q0 * k0 - jnp.sum(qs * ks_, -1, keepdims=True), 1.0)
    dist = jnp.arccosh(z)                                  # [N, 1]
    h1 = jax.nn.relu(dist @ w1.T + b1[:, 0])               # [N, 8]
    h2 = jax.nn.relu(h1 @ w2.T + b2[:, 0])                 # [N, 8]
    pre = h2 @ w3 + b3[0, 0]                               # [N, 1]
    v = 1.0 / (jax.nn.sigmoid(pre) + EPS)
    return v[:, 0]


if __name__ == "__main__":
    key = jax.random.PRNGKey(0)
    kq, kk, kp = jax.random.split(key, 3)

    N, D = 16, 4
    # Points strictly inside the unit ball (valid Poincare / Klein coordinates).
    q = 0.3 * jax.random.uniform(kq, (N, D), jnp.float32, -1.0, 1.0)
    k = 0.3 * jax.random.uniform(kk, (N, D), jnp.float32, -1.0, 1.0)
    params = init_params(kp)

    v = hyperbolic_alignment(q, k, params, q_klein=False, k_klein=False)
    jax.block_until_ready(v)

    assert v.shape == (N,)
    assert not bool(jnp.any(jnp.isnan(v)))

    v_ref = _reference(q, k, params, q_klein=False, k_klein=False)
    rel_err = float(jnp.max(jnp.abs(v - v_ref) / (jnp.abs(v_ref) + 1e-6)))
    assert rel_err < 5e-2, f"max rel err {rel_err}"
    print("KERNEL_OK")
</pallas_src>

<mosaic_0001>
module attributes {stable_mosaic.version = 11 : i64} {
  func.func @_hyperbolic_align_kernel(%arg0: i32, %arg1: memref<4x128xf32, #tpu.memory_space<vmem>>, %arg2: memref<4x128xf32, #tpu.memory_space<vmem>>, %arg3: memref<8x1xf32, #tpu.memory_space<vmem>>, %arg4: memref<8x1xf32, #tpu.memory_space<vmem>>, %arg5: memref<8x8xf32, #tpu.memory_space<vmem>>, %arg6: memref<8x1xf32, #tpu.memory_space<vmem>>, %arg7: memref<8x1xf32, #tpu.memory_space<vmem>>, %arg8: memref<1x1xf32, #tpu.memory_space<vmem>>, %arg9: memref<1x128xf32, #tpu.memory_space<vmem>>) attributes {dimension_semantics = [#tpu.dimension_semantics<parallel>], iteration_bounds = array<i64: 1>, scalar_prefetch = 0 : i64, scratch_operands = 0 : i64, tpu.core_type = #tpu.core_type<tc>, window_params = [{transform_indices = @transform_0, window_bounds = array<i64: 4, 128>}, {transform_indices = @transform_1, window_bounds = array<i64: 4, 128>}, {pipeline_mode = #tpu.pipeline_mode<synchronous>, transform_indices = @transform_2, window_bounds = array<i64: 8, 1>}, {pipeline_mode = #tpu.pipeline_mode<synchronous>, transform_indices = @transform_3, window_bounds = array<i64: 8, 1>}, {pipeline_mode = #tpu.pipeline_mode<synchronous>, transform_indices = @transform_4, window_bounds = array<i64: 8, 8>}, {pipeline_mode = #tpu.pipeline_mode<synchronous>, transform_indices = @transform_5, window_bounds = array<i64: 8, 1>}, {pipeline_mode = #tpu.pipeline_mode<synchronous>, transform_indices = @transform_6, window_bounds = array<i64: 8, 1>}, {pipeline_mode = #tpu.pipeline_mode<synchronous>, transform_indices = @transform_7, window_bounds = array<i64: 1, 1>}, {transform_indices = @transform_8, window_bounds = array<i64: 1, 128>}]} {
    %c0 = arith.constant 0 : index
    %c0_0 = arith.constant 0 : index
    %0 = vector.load %arg1[%c0, %c0_0] : memref<4x128xf32, #tpu.memory_space<vmem>>, vector<4x128xf32>
    %c0_1 = arith.constant 0 : index
    %c0_2 = arith.constant 0 : index
    %1 = vector.load %arg2[%c0_1, %c0_2] : memref<4x128xf32, #tpu.memory_space<vmem>>, vector<4x128xf32>
    %c0_3 = arith.constant 0 : index
    %c0_4 = arith.constant 0 : index
    %2 = vector.load %arg3[%c0_3, %c0_4] : memref<8x1xf32, #tpu.memory_space<vmem>>, vector<8x1xf32>
    %c0_5 = arith.constant 0 : index
    %c0_6 = arith.constant 0 : index
    %3 = vector.load %arg4[%c0_5, %c0_6] : memref<8x1xf32, #tpu.memory_space<vmem>>, vector<8x1xf32>
    %c0_7 = arith.constant 0 : index
    %c0_8 = arith.constant 0 : index
    %4 = vector.load %arg5[%c0_7, %c0_8] : memref<8x8xf32, #tpu.memory_space<vmem>>, vector<8x8xf32>
    %c0_9 = arith.constant 0 : index
    %c0_10 = arith.constant 0 : index
    %5 = vector.load %arg6[%c0_9, %c0_10] : memref<8x1xf32, #tpu.memory_space<vmem>>, vector<8x1xf32>
    %c0_11 = arith.constant 0 : index
    %c0_12 = arith.constant 0 : index
    %6 = vector.load %arg7[%c0_11, %c0_12] : memref<8x1xf32, #tpu.memory_space<vmem>>, vector<8x1xf32>
    %c0_13 = arith.constant 0 : index
    %c0_14 = arith.constant 0 : index
    %7 = vector.load %arg8[%c0_13, %c0_14] : memref<1x1xf32, #tpu.memory_space<vmem>>, vector<1x1xf32>
    %8 = vector.extract_strided_slice %0 {offsets = [0, 0], sizes = [1, 128], strides = [1, 1]} : vector<4x128xf32> to vector<1x128xf32>
    %9 = vector.extract_strided_slice %0 {offsets = [0, 0], sizes = [1, 128], strides = [1, 1]} : vector<4x128xf32> to vector<1x128xf32>
    %10 = arith.mulf %8, %9 : vector<1x128xf32>
    %11 = vector.extract_strided_slice %0 {offsets = [1, 0], sizes = [1, 128], strides = [1, 1]} : vector<4x128xf32> to vector<1x128xf32>
    %12 = vector.extract_strided_slice %0 {offsets = [1, 0], sizes = [1, 128], strides = [1, 1]} : vector<4x128xf32> to vector<1x128xf32>
    %13 = arith.mulf %11, %12 : vector<1x128xf32>
    %14 = arith.addf %10, %13 : vector<1x128xf32>
    %15 = vector.extract_strided_slice %0 {offsets = [2, 0], sizes = [1, 128], strides = [1, 1]} : vector<4x128xf32> to vector<1x128xf32>
    %16 = vector.extract_strided_slice %0 {offsets = [2, 0], sizes = [1, 128], strides = [1, 1]} : vector<4x128xf32> to vector<1x128xf32>
    %17 = arith.mulf %15, %16 : vector<1x128xf32>
    %18 = arith.addf %14, %17 : vector<1x128xf32>
    %19 = vector.extract_strided_slice %0 {offsets = [3, 0], sizes = [1, 128], strides = [1, 1]} : vector<4x128xf32> to vector<1x128xf32>
    %20 = vector.extract_strided_slice %0 {offsets = [3, 0], sizes = [1, 128], strides = [1, 1]} : vector<4x128xf32> to vector<1x128xf32>
    %21 = arith.mulf %19, %20 : vector<1x128xf32>
    %22 = arith.addf %18, %21 : vector<1x128xf32>
    %cst = arith.constant 0.999998986 : f32
    %23 = vector.broadcast %cst : f32 to vector<1x128xf32>
    %24 = arith.minimumf %22, %23 : vector<1x128xf32>
    %cst_15 = arith.constant 1.000000e+00 : f32
    %25 = vector.broadcast %cst_15 : f32 to vector<1x128xf32>
    %26 = arith.subf %25, %24 : vector<1x128xf32>
    %27 = tpu.reciprocal %26 {approx = true} : vector<1x128xf32> -> vector<1x128xf32>
    %cst_16 = arith.constant 1.000000e+00 : f32
    %28 = vector.broadcast %cst_16 : f32 to vector<1x128xf32>
    %29 = arith.addf %28, %24 : vector<1x128xf32>
    %30 = arith.mulf %29, %27 : vector<1x128xf32>
    %cst_17 = arith.constant 2.000000e+00 : f32
    %31 = vector.broadcast %cst_17 : f32 to vector<1x128xf32>
    %32 = arith.mulf %31, %27 : vector<1x128xf32>
    %33 = vector.broadcast %32 : vector<1x128xf32> to vector<4x128xf32>
    %34 = arith.mulf %0, %33 : vector<4x128xf32>
    %35 = vector.extract_strided_slice %1 {offsets = [0, 0], sizes = [1, 128], strides = [1, 1]} : vector<4x128xf32> to vector<1x128xf32>
    %36 = vector.extract_strided_slice %1 {offsets = [0, 0], sizes = [1, 128], strides = [1, 1]} : vector<4x128xf32> to vector<1x128xf32>
    %37 = arith.mulf %35, %36 : vector<1x128xf32>
    %38 = vector.extract_strided_slice %1 {offsets = [1, 0], sizes = [1, 128], strides = [1, 1]} : vector<4x128xf32> to vector<1x128xf32>
    %39 = vector.extract_strided_slice %1 {offsets = [1, 0], sizes = [1, 128], strides = [1, 1]} : vector<4x128xf32> to vector<1x128xf32>
    %40 = arith.mulf %38, %39 : vector<1x128xf32>
    %41 = arith.addf %37, %40 : vector<1x128xf32>
    %42 = vector.extract_strided_slice %1 {offsets = [2, 0], sizes = [1, 128], strides = [1, 1]} : vector<4x128xf32> to vector<1x128xf32>
    %43 = vector.extract_strided_slice %1 {offsets = [2, 0], sizes = [1, 128], strides = [1, 1]} : vector<4x128xf32> to vector<1x128xf32>
    %44 = arith.mulf %42, %43 : vector<1x128xf32>
    %45 = arith.addf %41, %44 : vector<1x128xf32>
    %46 = vector.extract_strided_slice %1 {offsets = [3, 0], sizes = [1, 128], strides = [1, 1]} : vector<4x128xf32> to vector<1x128xf32>
    %47 = vector.extract_strided_slice %1 {offsets = [3, 0], sizes = [1, 128], strides = [1, 1]} : vector<4x128xf32> to vector<1x128xf32>
    %48 = arith.mulf %46, %47 : vector<1x128xf32>
    %49 = arith.addf %45, %48 : vector<1x128xf32>
    %cst_18 = arith.constant 0.999998986 : f32
    %50 = vector.broadcast %cst_18 : f32 to vector<1x128xf32>
    %51 = arith.minimumf %49, %50 : vector<1x128xf32>
    %cst_19 = arith.constant 1.000000e+00 : f32
    %52 = vector.broadcast %cst_19 : f32 to vector<1x128xf32>
    %53 = arith.subf %52, %51 : vector<1x128xf32>
    %54 = tpu.reciprocal %53 {approx = true} : vector<1x128xf32> -> vector<1x128xf32>
    %cst_20 = arith.constant 1.000000e+00 : f32
    %55 = vector.broadcast %cst_20 : f32 to vector<1x128xf32>
    %56 = arith.addf %55, %51 : vector<1x128xf32>
    %57 = arith.mulf %56, %54 : vector<1x128xf32>
    %cst_21 = arith.constant 2.000000e+00 : f32
    %58 = vector.broadcast %cst_21 : f32 to vector<1x128xf32>
    %59 = arith.mulf %58, %54 : vector<1x128xf32>
    %60 = vector.broadcast %59 : vector<1x128xf32> to vector<4x128xf32>
    %61 = arith.mulf %1, %60 : vector<4x128xf32>
    %62 = vector.extract_strided_slice %34 {offsets = [0, 0], sizes = [1, 128], strides = [1, 1]} : vector<4x128xf32> to vector<1x128xf32>
    %63 = vector.extract_strided_slice %61 {offsets = [0, 0], sizes = [1, 128], strides = [1, 1]} : vector<4x128xf32> to vector<1x128xf32>
    %64 = arith.mulf %62, %63 : vector<1x128xf32>
    %65 = vector.extract_strided_slice %34 {offsets = [1, 0], sizes = [1, 128], strides = [1, 1]} : vector<4x128xf32> to vector<1x128xf32>
    %66 = vector.extract_strided_slice %61 {offsets = [1, 0], sizes = [1, 128], strides = [1, 1]} : vector<4x128xf32> to vector<1x128xf32>
    %67 = arith.mulf %65, %66 : vector<1x128xf32>
    %68 = arith.addf %64, %67 : vector<1x128xf32>
    %69 = vector.extract_strided_slice %34 {offsets = [2, 0], sizes = [1, 128], strides = [1, 1]} : vector<4x128xf32> to vector<1x128xf32>
    %70 = vector.extract_strided_slice %61 {offsets = [2, 0], sizes = [1, 128], strides = [1, 1]} : vector<4x128xf32> to vector<1x128xf32>
    %71 = arith.mulf %69, %70 : vector<1x128xf32>
    %72 = arith.addf %68, %71 : vector<1x128xf32>
    %73 = vector.extract_strided_slice %34 {offsets = [3, 0], sizes = [1, 128], strides = [1, 1]} : vector<4x128xf32> to vector<1x128xf32>
    %74 = vector.extract_strided_slice %61 {offsets = [3, 0], sizes = [1, 128], strides = [1, 1]} : vector<4x128xf32> to vector<1x128xf32>
    %75 = arith.mulf %73, %74 : vector<1x128xf32>
    %76 = arith.addf %72, %75 : vector<1x128xf32>
    %77 = arith.mulf %30, %57 : vector<1x128xf32>
    %78 = arith.subf %77, %76 : vector<1x128xf32>
    %cst_22 = arith.constant 1.000000e+00 : f32
    %79 = vector.broadcast %cst_22 : f32 to vector<1x128xf32>
    %80 = arith.maximumf %78, %79 : vector<1x128xf32>
    %cst_23 = arith.constant 1.000000e+00 : f32
    %81 = vector.broadcast %cst_23 : f32 to vector<1x128xf32>
    %82 = arith.subf %80, %81 : vector<1x128xf32>
    %cst_24 = arith.constant 1.000000e+00 : f32
    %83 = vector.broadcast %cst_24 : f32 to vector<1x128xf32>
    %84 = arith.addf %83, %82 : vector<1x128xf32>
    %cst_25 = arith.constant 1.000000e+00 : f32
    %85 = vector.broadcast %cst_25 : f32 to vector<1x128xf32>
    %86 = arith.addf %80, %85 : vector<1x128xf32>
    %87 = arith.mulf %82, %86 : vector<1x128xf32>
    %88 = math.sqrt %87 : vector<1x128xf32>
    %89 = arith.addf %84, %88 : vector<1x128xf32>
    %90 = math.log %89 : vector<1x128xf32>
    %91 = vector.broadcast %2 : vector<8x1xf32> to vector<8x128xf32>
    %92 = vector.broadcast %90 : vector<1x128xf32> to vector<8x128xf32>
    %93 = arith.mulf %91, %92 : vector<8x128xf32>
    %94 = vector.broadcast %3 : vector<8x1xf32> to vector<8x128xf32>
    %95 = arith.addf %93, %94 : vector<8x128xf32>
    %cst_26 = arith.constant 0.000000e+00 : f32
    %96 = vector.broadcast %cst_26 : f32 to vector<8x128xf32>
    %97 = arith.maximumf %95, %96 : vector<8x128xf32>
    %98 = vector.extract_strided_slice %4 {offsets = [0, 0], sizes = [8, 1], strides = [1, 1]} : vector<8x8xf32> to vector<8x1xf32>
    %99 = vector.extract_strided_slice %97 {offsets = [0, 0], sizes = [1, 128], strides = [1, 1]} : vector<8x128xf32> to vector<1x128xf32>
    %100 = vector.broadcast %98 : vector<8x1xf32> to vector<8x128xf32>
    %101 = vector.broadcast %99 : vector<1x128xf32> to vector<8x128xf32>
    %102 = arith.mulf %100, %101 : vector<8x128xf32>
    %103 = vector.extract_strided_slice %4 {offsets = [0, 1], sizes = [8, 1], strides = [1, 1]} : vector<8x8xf32> to vector<8x1xf32>
    %104 = vector.extract_strided_slice %97 {offsets = [1, 0], sizes = [1, 128], strides = [1, 1]} : vector<8x128xf32> to vector<1x128xf32>
    %105 = vector.broadcast %103 : vector<8x1xf32> to vector<8x128xf32>
    %106 = vector.broadcast %104 : vector<1x128xf32> to vector<8x128xf32>
    %107 = arith.mulf %105, %106 : vector<8x128xf32>
    %108 = arith.addf %102, %107 : vector<8x128xf32>
    %109 = vector.extract_strided_slice %4 {offsets = [0, 2], sizes = [8, 1], strides = [1, 1]} : vector<8x8xf32> to vector<8x1xf32>
    %110 = vector.extract_strided_slice %97 {offsets = [2, 0], sizes = [1, 128], strides = [1, 1]} : vector<8x128xf32> to vector<1x128xf32>
    %111 = vector.broadcast %109 : vector<8x1xf32> to vector<8x128xf32>
    %112 = vector.broadcast %110 : vector<1x128xf32> to vector<8x128xf32>
    %113 = arith.mulf %111, %112 : vector<8x128xf32>
    %114 = arith.addf %108, %113 : vector<8x128xf32>
    %115 = vector.extract_strided_slice %4 {offsets = [0, 3], sizes = [8, 1], strides = [1, 1]} : vector<8x8xf32> to vector<8x1xf32>
    %116 = vector.extract_strided_slice %97 {offsets = [3, 0], sizes = [1, 128], strides = [1, 1]} : vector<8x128xf32> to vector<1x128xf32>
    %117 = vector.broadcast %115 : vector<8x1xf32> to vector<8x128xf32>
    %118 = vector.broadcast %116 : vector<1x128xf32> to vector<8x128xf32>
    %119 = arith.mulf %117, %118 : vector<8x128xf32>
    %120 = arith.addf %114, %119 : vector<8x128xf32>
    %121 = vector.extract_strided_slice %4 {offsets = [0, 4], sizes = [8, 1], strides = [1, 1]} : vector<8x8xf32> to vector<8x1xf32>
    %122 = vector.extract_strided_slice %97 {offsets = [4, 0], sizes = [1, 128], strides = [1, 1]} : vector<8x128xf32> to vector<1x128xf32>
    %123 = vector.broadcast %121 : vector<8x1xf32> to vector<8x128xf32>
    %124 = vector.broadcast %122 : vector<1x128xf32> to vector<8x128xf32>
    %125 = arith.mulf %123, %124 : vector<8x128xf32>
    %126 = arith.addf %120, %125 : vector<8x128xf32>
    %127 = vector.extract_strided_slice %4 {offsets = [0, 5], sizes = [8, 1], strides = [1, 1]} : vector<8x8xf32> to vector<8x1xf32>
    %128 = vector.extract_strided_slice %97 {offsets = [5, 0], sizes = [1, 128], strides = [1, 1]} : vector<8x128xf32> to vector<1x128xf32>
    %129 = vector.broadcast %127 : vector<8x1xf32> to vector<8x128xf32>
    %130 = vector.broadcast %128 : vector<1x128xf32> to vector<8x128xf32>
    %131 = arith.mulf %129, %130 : vector<8x128xf32>
    %132 = arith.addf %126, %131 : vector<8x128xf32>
    %133 = vector.extract_strided_slice %4 {offsets = [0, 6], sizes = [8, 1], strides = [1, 1]} : vector<8x8xf32> to vector<8x1xf32>
    %134 = vector.extract_strided_slice %97 {offsets = [6, 0], sizes = [1, 128], strides = [1, 1]} : vector<8x128xf32> to vector<1x128xf32>
    %135 = vector.broadcast %133 : vector<8x1xf32> to vector<8x128xf32>
    %136 = vector.broadcast %134 : vector<1x128xf32> to vector<8x128xf32>
    %137 = arith.mulf %135, %136 : vector<8x128xf32>
    %138 = arith.addf %132, %137 : vector<8x128xf32>
    %139 = vector.extract_strided_slice %4 {offsets = [0, 7], sizes = [8, 1], strides = [1, 1]} : vector<8x8xf32> to vector<8x1xf32>
    %140 = vector.extract_strided_slice %97 {offsets = [7, 0], sizes = [1, 128], strides = [1, 1]} : vector<8x128xf32> to vector<1x128xf32>
    %141 = vector.broadcast %139 : vector<8x1xf32> to vector<8x128xf32>
    %142 = vector.broadcast %140 : vector<1x128xf32> to vector<8x128xf32>
    %143 = arith.mulf %141, %142 : vector<8x128xf32>
    %144 = arith.addf %138, %143 : vector<8x128xf32>
    %145 = vector.broadcast %5 : vector<8x1xf32> to vector<8x128xf32>
    %146 = arith.addf %144, %145 : vector<8x128xf32>
    %cst_27 = arith.constant 0.000000e+00 : f32
    %147 = vector.broadcast %cst_27 : f32 to vector<8x128xf32>
    %148 = arith.maximumf %146, %147 : vector<8x128xf32>
    %149 = vector.broadcast %6 : vector<8x1xf32> to vector<8x128xf32>
    %150 = arith.mulf %148, %149 : vector<8x128xf32>
    %cst_28 = arith.constant dense<0.000000e+00> : vector<128xf32>
    %151 = vector.multi_reduction <add>, %150, %cst_28 [0] : vector<8x128xf32> to vector<128xf32>
    %152 = vector.shape_cast %151 : vector<128xf32> to vector<1x128xf32>
    %153 = vector.broadcast %7 : vector<1x1xf32> to vector<1x128xf32>
    %154 = arith.addf %152, %153 : vector<1x128xf32>
    %cst_29 = arith.constant 5.000000e-01 : f32
    %155 = vector.broadcast %cst_29 : f32 to vector<1x128xf32>
    %156 = arith.mulf %155, %154 : vector<1x128xf32>
    %157 = math.tanh %156 : vector<1x128xf32>
    %cst_30 = arith.constant 5.000000e-01 : f32
    %158 = vector.broadcast %cst_30 : f32 to vector<1x128xf32>
    %159 = arith.mulf %158, %157 : vector<1x128xf32>
    %cst_31 = arith.constant 5.000000e-01 : f32
    %160 = vector.broadcast %cst_31 : f32 to vector<1x128xf32>
    %161 = arith.addf %159, %160 : vector<1x128xf32>
    %cst_32 = arith.constant 9.99999997E-7 : f32
    %162 = vector.broadcast %cst_32 : f32 to vector<1x128xf32>
    %163 = arith.addf %161, %162 : vector<1x128xf32>
    %164 = tpu.reciprocal %163 {approx = true} : vector<1x128xf32> -> vector<1x128xf32>
    %c0_33 = arith.constant 0 : index
    %c0_34 = arith.constant 0 : index
    %165 = vector.load %arg9[%c0_33, %c0_34] : memref<1x128xf32, #tpu.memory_space<vmem>>, vector<1x128xf32>
    tpu.vector_store %arg9[%c0_33, %c0_34], %164 {strides = array<i32>} : memref<1x128xf32, #tpu.memory_space<vmem>>, vector<1x128xf32>,
    return
  }
  func.func @transform_0(%arg0: i32) -> (i32, i32) {
    %c0_i32 = arith.constant 0 : i32
    %c0_i32_0 = arith.constant 0 : i32
    return %c0_i32, %arg0 : i32, i32
  }
  func.func @transform_1(%arg0: i32) -> (i32, i32) {
    %c0_i32 = arith.constant 0 : i32
    %c0_i32_0 = arith.constant 0 : i32
    return %c0_i32, %arg0 : i32, i32
  }
  func.func @transform_2(%arg0: i32) -> (i32, i32) {
    %c0_i32 = arith.constant 0 : i32
    %c0_i32_0 = arith.constant 0 : i32
    %c0_i32_1 = arith.constant 0 : i32
    return %c0_i32, %c0_i32_0 : i32, i32
  }
  func.func @transform_3(%arg0: i32) -> (i32, i32) {
    %c0_i32 = arith.constant 0 : i32
    %c0_i32_0 = arith.constant 0 : i32
    %c0_i32_1 = arith.constant 0 : i32
    return %c0_i32, %c0_i32_0 : i32, i32
  }
  func.func @transform_4(%arg0: i32) -> (i32, i32) {
    %c0_i32 = arith.constant 0 : i32
    %c0_i32_0 = arith.constant 0 : i32
    %c0_i32_1 = arith.constant 0 : i32
    return %c0_i32, %c0_i32_0 : i32, i32
  }
  func.func @transform_5(%arg0: i32) -> (i32, i32) {
    %c0_i32 = arith.constant 0 : i32
    %c0_i32_0 = arith.constant 0 : i32
    %c0_i32_1 = arith.constant 0 : i32
    return %c0_i32, %c0_i32_0 : i32, i32
  }
  func.func @transform_6(%arg0: i32) -> (i32, i32) {
    %c0_i32 = arith.constant 0 : i32
    %c0_i32_0 = arith.constant 0 : i32
    %c0_i32_1 = arith.constant 0 : i32
    return %c0_i32, %c0_i32_0 : i32, i32
  }
  func.func @transform_7(%arg0: i32) -> (i32, i32) {
    %c0_i32 = arith.constant 0 : i32
    %c0_i32_0 = arith.constant 0 : i32
    %c0_i32_1 = arith.constant 0 : i32
    return %c0_i32, %c0_i32_0 : i32, i32
  }
  func.func @transform_8(%arg0: i32) -> (i32, i32) {
    %c0_i32 = arith.constant 0 : i32
    %c0_i32_0 = arith.constant 0 : i32
    return %c0_i32, %arg0 : i32, i32
  }
}

</mosaic_0001>

<llo_original>
// kernel: tpu_custom_call.1
$region0: #{tpu_custom_call.1}
  #allocation0 [shape = 'u32[]', space=smem, size = 0x4, offset = 0x4, fixed_abs, tag = 'smem constant byte address 0x4 - core index']
  #allocation1 [shape = 'u32[144,128]{1,0:T(1,128)}', space=vmem, size = 0x12000, scoped, tag = 'internal scratch']
  #allocation2 [shape = 'f32[1,1]{1,0:T(1,128)S(1)}', space=vmem, size = 0x200, scoped, tag = 'scoped memory for tpu_custom_call.1']
  %s0 = inlined_call_operand.vmem [shape: f32[4,128], index: 0, kind: input, shape index: {}]
  %s1 = inlined_call_operand.vmem [shape: f32[4,128], index: 1, kind: input, shape index: {}]
  %s2 = inlined_call_operand.vmem [shape: f32[8,1], index: 2, kind: input, shape index: {}]
  %s3 = inlined_call_operand.vmem [shape: f32[8,1], index: 3, kind: input, shape index: {}]
  %s4 = inlined_call_operand.vmem [shape: f32[8,8], index: 4, kind: input, shape index: {}]
  %s5 = inlined_call_operand.vmem [shape: f32[8,1], index: 5, kind: input, shape index: {}]
  %s6 = inlined_call_operand.vmem [shape: f32[8,1], index: 6, kind: input, shape index: {}]
  %s7 = inlined_call_operand.<no memory space> [shape: f32[1,1], index: 7, kind: input, shape index: {}]
  %s8 = inlined_call_operand.hbm [shape: f32[1,128], index: 8, kind: output, shape index: {}]
  %s9 = sld [smem:[#allocation0]]
  $region42: #{tpu_custom_call.1} parent=0
    _
  %s11 = ssub.s32 1, %s9
  %s12 = scalar_select 0, %s11, %s9
  %v13 = vstv %s7
  %14 = vst [vmem:[#allocation2] sm:$0x1] %v13
  $region1: #{tpu_custom_call.1} parent=0
    #allocation3 [shape = 'u8[512]{0}', space=vmem, size = 0x400, scoped, tag = 'output window, operand 0, single buffered']
    #allocation4 [shape = 's32[1]{0}', space=sflag, size = 0x4, scoped, tag = 'scoped memory for tpu_custom_call.1']
    %15 = vsyncpa [#allocation4], 0
    // Predicated region
    $region2: #{tpu_custom_call.1} parent=1 // pred_check
      _
    $region3: #{tpu_custom_call.1} parent=1 // pred_check_branch
      %17 = sbr.rel (0) target = $region5
    $region4: #{tpu_custom_call.1} parent=1 // pred_region
      _
    $region5: #{tpu_custom_call.1} parent=1 // pred_fallthru
      _
    // Predicated region
    $region6: #{tpu_custom_call.1} parent=1 // pred_check
      _
    $region7: #{tpu_custom_call.1} parent=1 // pred_check_branch
      %19 = sbr.rel (0) target = $region9
    $region8: #{tpu_custom_call.1} parent=1 // pred_region
      _
    $region9: #{tpu_custom_call.1} parent=1 // pred_fallthru
      _
    // Predicated region
    $region10: #{tpu_custom_call.1} parent=1 // pred_check
      _
    $region11: #{tpu_custom_call.1} parent=1 // pred_check_branch
      %21 = sbr.rel (0) target = $region13
    $region12: #{tpu_custom_call.1} parent=1 // pred_region
      _
    $region13: #{tpu_custom_call.1} parent=1 // pred_fallthru
      _
    // Predicated region
    $region14: #{tpu_custom_call.1} parent=1 // pred_check
      _
    $region15: #{tpu_custom_call.1} parent=1 // pred_check_branch
      %23 = sbr.rel (0) target = $region17
    $region16: #{tpu_custom_call.1} parent=1 // pred_region
      _
    $region17: #{tpu_custom_call.1} parent=1 // pred_fallthru
      _
    // Predicated region
    $region18: #{tpu_custom_call.1} parent=1 // pred_check
      _
    $region19: #{tpu_custom_call.1} parent=1 // pred_check_branch
      %25 = sbr.rel (0) target = $region21
    $region20: #{tpu_custom_call.1} parent=1 // pred_region
      _
    $region21: #{tpu_custom_call.1} parent=1 // pred_fallthru
      _
    // Predicated region
    $region22: #{tpu_custom_call.1} parent=1 // pred_check
      _
    $region23: #{tpu_custom_call.1} parent=1 // pred_check_branch
      %27 = sbr.rel (0) target = $region25
    $region24: #{tpu_custom_call.1} parent=1 // pred_region
      _
    $region25: #{tpu_custom_call.1} parent=1 // pred_fallthru
      _
    // Predicated region
    $region26: #{tpu_custom_call.1} parent=1 // pred_check
      _
    $region27: #{tpu_custom_call.1} parent=1 // pred_check_branch
      %29 = sbr.rel (0) target = $region29
    $region28: #{tpu_custom_call.1} parent=1 // pred_region
      _
    $region29: #{tpu_custom_call.1} parent=1 // pred_fallthru
      _
    // Predicated region
    $region30: #{tpu_custom_call.1} parent=1 // pred_check
      _
    $region31: #{tpu_custom_call.1} parent=1 // pred_check_branch
      %31 = sbr.rel (0) target = $region33
    $region32: #{tpu_custom_call.1} parent=1 // pred_region
      _
    $region33: #{tpu_custom_call.1} parent=1 // pred_fallthru
      _
    %v32 = vld [vmem:[%s0] sm:$0xf]
    %v33 = vld [vmem:[%s1] sm:$0xf]
    %v34 = vld [vmem:[%s2] sm:$0xff]
    %v35 = vld [vmem:[%s3] sm:$0xff]
    %v36 = vld [vmem:[%s4] sm:$0xff]
    %v37 = vld [vmem:[%s5] sm:$0xff]
    %v38 = vld [vmem:[%s6] sm:$0xff]
    %v39 = vld [vmem:[#allocation2] sm:$0x1]
    %v40 = vmul.f32 %v32, %v32
    %v42 = vrot.slane %v40, 1
    %v44 = vadd.f32 %v40, %v42
    %v45 = vrot.slane %v40, 2
    %v47 = vadd.f32 %v44, %v45
    %v48 = vrot.slane %v40, 3
    %v50 = vadd.f32 %v47, %v48
    %v51 = vmin.f32 %v50, 0.999999
    %v52 = vsub.f32 1.0, %v51
    %v53 = vrcp.pop %v52
    %v54 = vadd.f32 %v51, 1.0
    %v55 = vmul.f32 %v54, %v53
    %v56 = vmul.f32 %v53, 2.0
    %v57 = vlaneseq
    %v58 = vshrl.u32 %v57, 7
    %v59 = vsub.s32 0, %v58
    %v60 = vrot.slane %v56, %v59
    %v61 = vmul.f32 %v32, %v60
    %v62 = vmul.f32 %v33, %v33
    %v64 = vrot.slane %v62, 1
    %v66 = vadd.f32 %v62, %v64
    %v67 = vrot.slane %v62, 2
    %v69 = vadd.f32 %v66, %v67
    %v70 = vrot.slane %v62, 3
    %v72 = vadd.f32 %v69, %v70
    %v73 = vmin.f32 %v72, 0.999999
    %v74 = vsub.f32 1.0, %v73
    %v75 = vrcp.pop %v74
    %v76 = vadd.f32 %v73, 1.0
    %v77 = vmul.f32 %v76, %v75
    %v78 = vmul.f32 %v75, 2.0
    %v79 = vlaneseq
    %v80 = vshrl.u32 %v79, 7
    %v81 = vsub.s32 0, %v80
    %v82 = vrot.slane %v78, %v81
    %v83 = vmul.f32 %v33, %v82
    %v84 = vmul.f32 %v61, %v83
    %v86 = vrot.slane %v84, 1
    %v88 = vadd.f32 %v84, %v86
    %v89 = vrot.slane %v84, 2
    %v91 = vadd.f32 %v88, %v89
    %v92 = vrot.slane %v84, 3
    %v94 = vadd.f32 %v91, %v92
    %v95 = vmul.f32 %v55, %v77
    %v96 = vsub.f32 %v95, %v94
    %v97 = vmax.f32 %v96, 1.0
    %v98 = vsub.f32 %v97, 1.0
    %v99 = vadd.f32 %v98, 1.0
    %v100 = vadd.f32 %v97, 1.0
    %v101 = vmul.f32 %v98, %v100
    %v102 = vrsqrt.pop %v101
    %v103 = vmul.f32 %v101, %v102
    %vm104 = vcmp.eq.f32.partialorder %v101, inf
    %v105 = vsel %vm104, %v101, %v103
    %vm106 = vcmp.eq.f32.partialorder %v101, 0.0
    %v107 = vand.u32 %v101, 2147483648
    %v108 = vsel %vm106, %v107, %v105
    %v109 = vadd.f32 %v99, %v108
    %v110 = vlog2.pop %v109
    %v111 = vmul.f32 %v110, 0.6931472
    %113 = vset.pattern.permute.xlu0 0
    %114 = vperm.xlu0 %113, %v34
    %v115 = vpop.permute.xlu0 %114
    %v117 = vlaneseq
    %v118 = vshrl.u32 %v117, 7
    %v119 = vsub.s32 0, %v118
    %v120 = vrot.slane %v111, %v119
    %v121 = vmul.f32 %v115, %v120
    %123 = vset.pattern.permute.xlu0 0
    %124 = vperm.xlu0 %123, %v35
    %v125 = vpop.permute.xlu0 %124
    %v127 = vadd.f32 %v121, %v125
    %v128 = vmax.f32 %v127, 0.0
    %130 = vset.pattern.permute.xlu0 0
    %131 = vperm.xlu0 %130, %v36
    %v132 = vpop.permute.xlu0 %131
    %v134 = vlaneseq
    %v135 = vshrl.u32 %v134, 7
    %v136 = vsub.s32 0, %v135
    %v137 = vrot.slane %v128, %v136
    %v138 = vmul.f32 %v132, %v137
    %139 = vset.pattern.permute.xlu0 1
    %140 = vperm.xlu0 %139, %v36
    %v141 = vpop.permute.xlu0 %140
    %v143 = vlaneseq
    %v144 = vshrl.u32 %v143, 7
    %v145 = vsub.s32 1, %v144
    %v146 = vrot.slane %v128, %v145
    %v147 = vmul.f32 %v141, %v146
    %v148 = vadd.f32 %v138, %v147
    %149 = vset.pattern.permute.xlu0 2
    %150 = vperm.xlu0 %149, %v36
    %v151 = vpop.permute.xlu0 %150
    %v153 = vlaneseq
    %v154 = vshrl.u32 %v153, 7
    %v155 = vsub.s32 2, %v154
    %v156 = vrot.slane %v128, %v155
    %v157 = vmul.f32 %v151, %v156
    %v158 = vadd.f32 %v148, %v157
    %159 = vset.pattern.permute.xlu0 3
    %160 = vperm.xlu0 %159, %v36
    %v161 = vpop.permute.xlu0 %160
    %v163 = vlaneseq
    %v164 = vshrl.u32 %v163, 7
    %v165 = vsub.s32 3, %v164
    %v166 = vrot.slane %v128, %v165
    %v167 = vmul.f32 %v161, %v166
    %v168 = vadd.f32 %v158, %v167
    %169 = vset.pattern.permute.xlu0 4
    %170 = vperm.xlu0 %169, %v36
    %v171 = vpop.permute.xlu0 %170
    %v173 = vlaneseq
    %v174 = vshrl.u32 %v173, 7
    %v175 = vsub.s32 4, %v174
    %v176 = vrot.slane %v128, %v175
    %v177 = vmul.f32 %v171, %v176
    %v178 = vadd.f32 %v168, %v177
    %179 = vset.pattern.permute.xlu0 5
    %180 = vperm.xlu0 %179, %v36
    %v181 = vpop.permute.xlu0 %180
    %v183 = vlaneseq
    %v184 = vshrl.u32 %v183, 7
    %v185 = vsub.s32 5, %v184
    %v186 = vrot.slane %v128, %v185
    %v187 = vmul.f32 %v181, %v186
    %v188 = vadd.f32 %v178, %v187
    %189 = vset.pattern.permute.xlu0 6
    %190 = vperm.xlu0 %189, %v36
    %v191 = vpop.permute.xlu0 %190
    %v193 = vlaneseq
    %v194 = vshrl.u32 %v193, 7
    %v195 = vsub.s32 6, %v194
    %v196 = vrot.slane %v128, %v195
    %v197 = vmul.f32 %v191, %v196
    %v198 = vadd.f32 %v188, %v197
    %199 = vset.pattern.permute.xlu0 7
    %200 = vperm.xlu0 %199, %v36
    %v201 = vpop.permute.xlu0 %200
    %v203 = vlaneseq
    %v204 = vshrl.u32 %v203, 7
    %v205 = vsub.s32 7, %v204
    %v206 = vrot.slane %v128, %v205
    %v207 = vmul.f32 %v201, %v206
    %v208 = vadd.f32 %v198, %v207
    %210 = vset.pattern.permute.xlu0 0
    %211 = vperm.xlu0 %210, %v37
    %v212 = vpop.permute.xlu0 %211
    %v214 = vadd.f32 %v208, %v212
    %v215 = vmax.f32 %v214, 0.0
    %217 = vset.pattern.permute.xlu0 0
    %218 = vperm.xlu0 %217, %v38
    %v219 = vpop.permute.xlu0 %218
    %v221 = vmul.f32 %v215, %v219
    %v222 = vrot.slane %v221, 4
    %v223 = vadd.f32 %v221, %v222
    %v224 = vrot.slane %v223, 2
    %v225 = vadd.f32 %v223, %v224
    %v226 = vrot.slane %v225, 1
    %v227 = vadd.f32 %v225, %v226
    %229 = vset.pattern.permute.xlu0 0
    %230 = vperm.xlu0 %229, %v39
    %v231 = vpop.permute.xlu0 %230
    %v233 = vlaneseq
    %v234 = vshrl.u32 %v233, 7
    %v235 = vsub.s32 0, %v234
    %v236 = vrot.slane %v231, %v235
    %v237 = vadd.f32 %v227, %v236
    %v238 = vmul.f32 %v237, 0.5
    %v239 = vtanh.pop %v238
    %v240 = vmul.f32 %v239, 0.5
    %v241 = vadd.f32 %v240, 0.5
    %v242 = vadd.f32 %v241, 1e-06
    %v243 = vrcp.pop %v242
    %244 = vst [vmem:[#allocation3] sm:$0x1] %v243
    // Predicated region
    $region34: #{tpu_custom_call.1} parent=1 // pred_check
      _
    $region35: #{tpu_custom_call.1} parent=1 // pred_check_branch
      %246 = sbr.rel (0) target = $region37
    $region36: #{tpu_custom_call.1} parent=1 // pred_region
      %s248 = ssub.s32 16, 16
      %249 = vsyncadd [#allocation4], %s248
      %s251 = sshll.u32 [#allocation3], 4
      %s252 = int_to_ptr.vmem [resolvable:$true] %s251
      %254 = dma.vmem_to_hbm [thread:$0]  %s252, 16, %s8, [#allocation4]
    $region37: #{tpu_custom_call.1} parent=1 // pred_fallthru
      _
    // Predicated region
    $region38: #{tpu_custom_call.1} parent=1 // pred_check
      _
    $region39: #{tpu_custom_call.1} parent=1 // pred_check_branch
      %256 = sbr.rel (0) target = $region41
    $region40: #{tpu_custom_call.1} parent=1 // pred_region
      %257 = dma.done [#allocation4], 16
    $region41: #{tpu_custom_call.1} parent=1 // pred_fallthru
      _
    %258 = vsyncpa [#allocation4], 1

</llo_original>
